<compile_context>
chip_gen: v6e
topology: v6e:2x2x1
jax: 0.10.0
libtpu: 0.0.40
codegen_flags: <defaults>
</compile_context>

<pallas_src>
import jax
import jax.numpy as jnp
from jax.experimental import pallas as pl
from jax.experimental.pallas import tpu as pltpu


# ----------------------------------------------------------------------------
# VMEM sizing derived from the hardware generation.
# ----------------------------------------------------------------------------
_VMEM_LIMIT_CACHE = []


def _vmem_limit_bytes():
    if not _VMEM_LIMIT_CACHE:
        cap = 64 * 1024 * 1024                      # conservative fallback
        try:
            cap = int(pltpu.get_tpu_info().vmem_capacity_bytes)
        except Exception:
            pass
        _VMEM_LIMIT_CACHE.append(max(32 * 1024 * 1024, (cap * 3) // 5))
    return _VMEM_LIMIT_CACHE[0]


def _tile_budget_bytes():
    # leave headroom for compiler-internal scratch
    return max(16 * 1024 * 1024, _vmem_limit_bytes() - 6 * 1024 * 1024)


# ----------------------------------------------------------------------------
# Pallas kernel: one (tm, K) x (K, tn) matmul tile + bias, f32 accumulation.
# ----------------------------------------------------------------------------
def _deconv_matmul_kernel(x_ref, w_ref, b_ref, o_ref):
    acc = jnp.dot(x_ref[...], w_ref[...], preferred_element_type=jnp.float32)
    o_ref[...] = (acc + b_ref[...]).astype(o_ref.dtype)


def _choose_tm(rows, K, Nc, x_bytes, o_bytes, target=1024):
    """Largest multiple-of-8 divisor of `rows` (<= target) whose tiles fit the
    VMEM budget.  Divisor => no pad / slice HBM round trips ever."""
    if rows <= 8 or rows % 8 != 0:
        return rows                                  # single full-height tile
    w_bytes = K * Nc * 2 + Nc * 4                    # single-buffered weight + bias
    per_row = 2 * (K * x_bytes + Nc * o_bytes)       # double-buffered x / out tiles
    avail = max(_tile_budget_bytes() - w_bytes, 8 * per_row)
    cap = int(min(target, avail // per_row, rows))
    cap = max(8, (cap // 8) * 8)
    for tm in range(cap, 7, -8):
        if rows % tm == 0:
            return tm
    return 8


def _matmul_bias_pallas(x2d, w2d, b2d, out_dtype):
    """(rows, K) @ (K, Nc) + (1, Nc) -> (rows, Nc), tiled over rows (and over
    columns for tiny-M / wide-N layers)."""
    rows, K = x2d.shape
    Nc = w2d.shape[1]
    x_bytes = jnp.dtype(x2d.dtype).itemsize
    o_bytes = jnp.dtype(out_dtype).itemsize

    tm = _choose_tm(rows, K, Nc, x_bytes, o_bytes)
    gm = rows // tm
    if gm * tm != rows:                              # safety (should not happen)
        tm, gm = rows, 1

    # Tiny-M, wide-N layers: split columns instead of shrinking tm so a
    # dual-TensorCore part (v7x) can split the grid; near-free elsewhere.
    if gm == 1 and Nc >= 1024 and Nc % 256 == 0:
        tn, gn = Nc // 2, 2
    else:
        tn, gn = Nc, 1

    # Weight / bias are fully resident when gn == 1 -> single-buffer them.
    wb_mode = pl.Buffered(1) if gn == 1 else None

    cost = pl.CostEstimate(
        flops=2 * rows * K * Nc,
        transcendentals=0,
        bytes_accessed=(gn * rows * K * x_bytes
                        + K * Nc * jnp.dtype(w2d.dtype).itemsize
                        + Nc * 4
                        + rows * Nc * o_bytes),
    )

    return pl.pallas_call(
        _deconv_matmul_kernel,
        out_shape=jax.ShapeDtypeStruct((rows, Nc), out_dtype),
        grid_spec=pltpu.PrefetchScalarGridSpec(
            num_scalar_prefetch=0,
            grid=(gm, gn),
            in_specs=[
                pl.BlockSpec((tm, K), lambda i, j: (i, 0)),
                pl.BlockSpec((K, tn), lambda i, j: (0, j), pipeline_mode=wb_mode),
                pl.BlockSpec((1, tn), lambda i, j: (0, j), pipeline_mode=wb_mode),
            ],
            out_specs=pl.BlockSpec((tm, tn), lambda i, j: (i, j)),
        ),
        compiler_params=pltpu.CompilerParams(
            dimension_semantics=("parallel", "parallel"),
            vmem_limit_bytes=_vmem_limit_bytes(),
        ),
        cost_estimate=cost,
    )(x2d, w2d, b2d)


# ----------------------------------------------------------------------------
# One ConvTranspose3d(kernel=2, stride=2) layer on flat channels-last rows.
# ----------------------------------------------------------------------------
def conv_transpose3d_k2s2_flat(x2d, w, b, *, out_dtype=jnp.bfloat16):
    """x2d: (M, Cin) flat rows (channels last / fastest), any fixed row order.
       w:   (Cin, Cout, 2, 2, 2)  PyTorch ConvTranspose3d weight layout.
       b:   (Cout,)
       returns (8*M, Cout): each input row expands to 8 consecutive rows in
       (kd, kh, kw) order — the spatial de-interleave is deferred to the caller.
    """
    M, Cin = x2d.shape
    Cout = w.shape[1]
    Nc = 8 * Cout

    # weight -> (Cin, 8*Cout); column order (kd, kh, kw, co), co fastest
    w2d = jnp.transpose(w, (0, 2, 3, 4, 1)).reshape(Cin, Nc)
    b_cols = jnp.tile(b, 8)

    # Lane-dense LHS and RHS: fold r consecutive rows into one kernel row via a
    # block-diagonal weight so both r*Cin and r*Nc are >= 128.  The row-major
    # (M//r, r*C) view of a flat (M, C) array is a free reshape.
    r = 1
    while (Nc * r < 128 or Cin * r < 128) and M % (2 * r) == 0 and r < 32:
        r *= 2
    if r > 1:
        w2d = jnp.kron(jnp.eye(r, dtype=w2d.dtype), w2d)   # (r*Cin, r*Nc)
        b_cols = jnp.tile(b_cols, r)

    xg = x2d.reshape(M // r, r * Cin).astype(jnp.bfloat16)
    wg = w2d.astype(jnp.bfloat16)
    bg = b_cols.reshape(1, -1).astype(jnp.float32)

    y = _matmul_bias_pallas(xg, wg, bg, out_dtype)          # (M//r, r*Nc)
    return y.reshape(8 * M, Cout)                           # free reinterpret


def conv_decoder_forward(x_ncdhw, params):
    """SSLHead deconv decoder: stack of ConvTranspose3d(k=2, s=2) layers.
    NCDHW in / NCDHW out.  Activations stay as flat channels-last rows between
    layers; the interleave of ALL layers is a single final permutation."""
    N, C, D, H, W = x_ncdhw.shape
    x = jnp.transpose(x_ncdhw, (0, 2, 3, 4, 1)).reshape(N * D * H * W, C)

    L = len(params)
    for li, (w, b) in enumerate(params):
        last = li == L - 1
        x = conv_transpose3d_k2s2_flat(
            x, w, b, out_dtype=jnp.float32 if last else jnp.bfloat16)

    Cout = params[-1][1].shape[0]
    # Row order is (n, d, h, w, kd1, kh1, kw1, ..., kdL, khL, kwL).
    y = x.reshape((N, D, H, W) + (2,) * (3 * L) + (Cout,))
    kd = [4 + 3 * l + 0 for l in range(L)]
    kh = [4 + 3 * l + 1 for l in range(L)]
    kw = [4 + 3 * l + 2 for l in range(L)]
    perm = [0, 4 + 3 * L, 1, *kd, 2, *kh, 3, *kw]
    y = jnp.transpose(y, perm)                      # one composed de-interleave
    s = 2 ** L
    return y.reshape(N, Cout, s * D, s * H, s * W)


# ----------------------------------------------------------------------------
# Synthetic params + pure-JAX reference (mirrors the bf16 operand casts).
# ----------------------------------------------------------------------------
def make_conv_decoder_params(dim, out_channels, key):
    if dim == 768:
        chans = [dim, dim // 2, dim // 4, dim // 8, dim // 16, out_channels]
    elif dim == 384:
        chans = [dim, dim // 2, dim // 4, dim // 8, out_channels]
    elif dim == 192:
        chans = [dim, dim // 2, dim // 4, out_channels]
    elif dim == 96:
        chans = [dim, dim // 2, out_channels]
    elif dim == 48:
        chans = [dim, out_channels]
    else:
        raise ValueError(f"unsupported dim {dim}")

    params = []
    for cin, cout in zip(chans[:-1], chans[1:]):
        key, kw, kb = jax.random.split(key, 3)
        scale = 1.0 / jnp.sqrt(cin * 8.0)
        w = jax.random.uniform(kw, (cin, cout, 2, 2, 2), jnp.float32,
                               -scale, scale)
        b = jax.random.uniform(kb, (cout,), jnp.float32, -scale, scale)
        params.append((w, b))
    return params


def _ref_layer_cl(x_cl, w, b, out_dtype):
    # Reference ConvTranspose3d(k=2, s=2) with the same bf16 operand casts.
    xb = x_cl.astype(jnp.bfloat16)
    wb = w.astype(jnp.bfloat16)
    y = jnp.einsum('ndhwi,iojkl->ndjhkwlo', xb, wb,
                   preferred_element_type=jnp.float32)
    N, D, H, W, _ = x_cl.shape
    Cout = w.shape[1]
    y = y.reshape(N, 2 * D, 2 * H, 2 * W, Cout) + b.astype(jnp.float32)
    return y.astype(out_dtype)


if __name__ == "__main__":
    key = jax.random.PRNGKey(0)
    k_x, k_p = jax.random.split(key)

    # Small config: dim=96 -> two ConvTranspose3d layers (96 -> 48 -> 4)
    dim, out_channels = 96, 4
    N, D, H, W = 2, 2, 2, 2
    x = jax.random.normal(k_x, (N, dim, D, H, W), jnp.float32)
    params = make_conv_decoder_params(dim, out_channels, k_p)

    out = jax.jit(conv_decoder_forward)(x, params)
    out = jax.block_until_ready(out)
    assert out.shape == (N, out_channels, D * 4, H * 4, W * 4), out.shape

    # Numerical check against a pure-JAX per-layer reference of the deconv stack
    ref = jnp.transpose(x, (0, 2, 3, 4, 1))
    for li, (w, b) in enumerate(params):
        last = li == len(params) - 1
        ref = _ref_layer_cl(ref, w, b, jnp.float32 if last else jnp.bfloat16)
    ref = jnp.transpose(ref, (0, 4, 1, 2, 3))

    assert jnp.allclose(out, ref, atol=1e-2, rtol=1e-2), \
        float(jnp.max(jnp.abs(out - ref)))

    print("KERNEL_OK")
</pallas_src>

<mosaic_0001>
module attributes {stable_mosaic.version = 11 : i64} {
  func.func @_deconv_matmul_kernel(%arg0: i32, %arg1: i32, %arg2: memref<8x192xbf16, #tpu.memory_space<vmem>>, %arg3: memref<192x768xbf16, #tpu.memory_space<vmem>>, %arg4: memref<1x768xf32, #tpu.memory_space<vmem>>, %arg5: memref<8x768xbf16, #tpu.memory_space<vmem>>) attributes {dimension_semantics = [#tpu.dimension_semantics<parallel>, #tpu.dimension_semantics<parallel>], iteration_bounds = array<i64: 1, 1>, scalar_prefetch = 0 : i64, scratch_operands = 0 : i64, tpu.core_type = #tpu.core_type<tc>, window_params = [{transform_indices = @transform_0, window_bounds = array<i64: 8, 192>}, {pipeline_mode = #tpu.pipeline_mode<synchronous>, transform_indices = @transform_1, window_bounds = array<i64: 192, 768>}, {pipeline_mode = #tpu.pipeline_mode<synchronous>, transform_indices = @transform_2, window_bounds = array<i64: 1, 768>}, {transform_indices = @transform_3, window_bounds = array<i64: 8, 768>}]} {
    %c0 = arith.constant 0 : index
    %c0_0 = arith.constant 0 : index
    %0 = vector.load %arg2[%c0, %c0_0] : memref<8x192xbf16, #tpu.memory_space<vmem>>, vector<8x192xbf16>
    %c0_1 = arith.constant 0 : index
    %c0_2 = arith.constant 0 : index
    %1 = vector.load %arg3[%c0_1, %c0_2] : memref<192x768xbf16, #tpu.memory_space<vmem>>, vector<192x768xbf16>
    %cst = arith.constant dense<0.000000e+00> : vector<8x768xf32>
    %2 = tpu.matmul %0, %1, %cst {dimension_numbers = #tpu.dot_dimension_numbers<[1], [0], [0], [1], [0, 0, 1, 1], [], []>} : vector<8x192xbf16>, vector<192x768xbf16>, vector<8x768xf32> -> vector<8x768xf32>
    %c0_3 = arith.constant 0 : index
    %c0_4 = arith.constant 0 : index
    %3 = vector.load %arg4[%c0_3, %c0_4] : memref<1x768xf32, #tpu.memory_space<vmem>>, vector<1x768xf32>
    %4 = vector.broadcast %3 : vector<1x768xf32> to vector<8x768xf32>
    %5 = arith.addf %2, %4 : vector<8x768xf32>
    %6 = arith.truncf %5 : vector<8x768xf32> to vector<8x768xbf16>
    %c0_5 = arith.constant 0 : index
    %c0_6 = arith.constant 0 : index
    %7 = vector.load %arg5[%c0_5, %c0_6] : memref<8x768xbf16, #tpu.memory_space<vmem>>, vector<8x768xbf16>
    tpu.vector_store %arg5[%c0_5, %c0_6], %6 {strides = array<i32>} : memref<8x768xbf16, #tpu.memory_space<vmem>>, vector<8x768xbf16>,
    return
  }
  func.func @transform_0(%arg0: i32, %arg1: i32) -> (i32, i32) {
    %c0_i32 = arith.constant 0 : i32
    %c0_i32_0 = arith.constant 0 : i32
    return %arg0, %c0_i32 : i32, i32
  }
  func.func @transform_1(%arg0: i32, %arg1: i32) -> (i32, i32) {
    %c0_i32 = arith.constant 0 : i32
    %c0_i32_0 = arith.constant 0 : i32
    return %c0_i32, %arg1 : i32, i32
  }
  func.func @transform_2(%arg0: i32, %arg1: i32) -> (i32, i32) {
    %c0_i32 = arith.constant 0 : i32
    %c0_i32_0 = arith.constant 0 : i32
    return %c0_i32, %arg1 : i32, i32
  }
  func.func @transform_3(%arg0: i32, %arg1: i32) -> (i32, i32) {
    %c0_i32 = arith.constant 0 : i32
    return %arg0, %arg1 : i32, i32
  }
}

module attributes {stable_mosaic.version = 11 : i64} {
  func.func @_deconv_matmul_kernel(%arg0: i32, %arg1: i32, %arg2: memref<32x192xbf16, #tpu.memory_space<vmem>>, %arg3: memref<192x128xbf16, #tpu.memory_space<vmem>>, %arg4: memref<1x128xf32, #tpu.memory_space<vmem>>, %arg5: memref<32x128xf32, #tpu.memory_space<vmem>>) attributes {dimension_semantics = [#tpu.dimension_semantics<parallel>, #tpu.dimension_semantics<parallel>], iteration_bounds = array<i64: 1, 1>, scalar_prefetch = 0 : i64, scratch_operands = 0 : i64, tpu.core_type = #tpu.core_type<tc>, window_params = [{transform_indices = @transform_0, window_bounds = array<i64: 32, 192>}, {pipeline_mode = #tpu.pipeline_mode<synchronous>, transform_indices = @transform_1, window_bounds = array<i64: 192, 128>}, {pipeline_mode = #tpu.pipeline_mode<synchronous>, transform_indices = @transform_2, window_bounds = array<i64: 1, 128>}, {transform_indices = @transform_3, window_bounds = array<i64: 32, 128>}]} {
    %c0 = arith.constant 0 : index
    %c0_0 = arith.constant 0 : index
    %0 = vector.load %arg2[%c0, %c0_0] : memref<32x192xbf16, #tpu.memory_space<vmem>>, vector<32x192xbf16>
    %c0_1 = arith.constant 0 : index
    %c0_2 = arith.constant 0 : index
    %1 = vector.load %arg3[%c0_1, %c0_2] : memref<192x128xbf16, #tpu.memory_space<vmem>>, vector<192x128xbf16>
    %cst = arith.constant dense<0.000000e+00> : vector<32x128xf32>
    %2 = tpu.matmul %0, %1, %cst {dimension_numbers = #tpu.dot_dimension_numbers<[1], [0], [0], [1], [0, 0, 1, 1], [], []>} : vector<32x192xbf16>, vector<192x128xbf16>, vector<32x128xf32> -> vector<32x128xf32>
    %c0_3 = arith.constant 0 : index
    %c0_4 = arith.constant 0 : index
    %3 = vector.load %arg4[%c0_3, %c0_4] : memref<1x128xf32, #tpu.memory_space<vmem>>, vector<1x128xf32>
    %4 = vector.broadcast %3 : vector<1x128xf32> to vector<32x128xf32>
    %5 = arith.addf %2, %4 : vector<32x128xf32>
    %c0_5 = arith.constant 0 : index
    %c0_6 = arith.constant 0 : index
    %6 = vector.load %arg5[%c0_5, %c0_6] : memref<32x128xf32, #tpu.memory_space<vmem>>, vector<32x128xf32>
    tpu.vector_store %arg5[%c0_5, %c0_6], %5 {strides = array<i32>} : memref<32x128xf32, #tpu.memory_space<vmem>>, vector<32x128xf32>,
    return
  }
  func.func @transform_0(%arg0: i32, %arg1: i32) -> (i32, i32) {
    %c0_i32 = arith.constant 0 : i32
    %c0_i32_0 = arith.constant 0 : i32
    return %arg0, %c0_i32 : i32, i32
  }
  func.func @transform_1(%arg0: i32, %arg1: i32) -> (i32, i32) {
    %c0_i32 = arith.constant 0 : i32
    %c0_i32_0 = arith.constant 0 : i32
    return %c0_i32, %arg1 : i32, i32
  }
  func.func @transform_2(%arg0: i32, %arg1: i32) -> (i32, i32) {
    %c0_i32 = arith.constant 0 : i32
    %c0_i32_0 = arith.constant 0 : i32
    return %c0_i32, %arg1 : i32, i32
  }
  func.func @transform_3(%arg0: i32, %arg1: i32) -> (i32, i32) {
    %c0_i32 = arith.constant 0 : i32
    return %arg0, %arg1 : i32, i32
  }
}

</mosaic_0001>

<llo_original>
// kernel: tile.24
$region0: #{tile.24}
  %s0 = inlined_call_operand.vmem [shape: f32[8,48], index: 0, kind: input, shape index: {}]
  %s1 = inlined_call_operand.vmem [shape: f32[384], index: 1, kind: output, shape index: {}]
  $region1: #{tile.24} parent=0
    #allocation0 [shape = 'u8[4096]{0}', space=vmem, size = 0x1000, scoped, tag = 'scoped mem for output reshape']
    %v2 = vld [vmem:[%s0] sm:$0x1]
    %vm3 = vcmask 392192
    %4 = vst.msk [vmem:[#allocation0] sm:$0x1] %vm3, %v2
    %s5 = scalar_lea.vmem %s0, 5
    %v6 = vld [vmem:[%s5] sm:$0x1]
    %s7 = scalar_lea.vmem %s0, 5
    %v8 = vld [vmem:[%s7] sm:$0x1]
    %vm9 = vcmask 130048
    %v10 = vsel %vm9, %v8, %v6
    %11 = vrot.lane.b32.xlu0 %v10, 112
    %v12 = vpop.permute.xlu0 %11
    %vm13 = vcmask 261120
    %s14 = scalar_lea.vmem [#allocation0], 2
    %15 = vst.msk [vmem:[%s14] sm:$0x1] %vm13, %v12
    %vm16 = vcmask 1048448
    %s17 = scalar_lea.vmem [#allocation0], 1
    %18 = vst.msk [vmem:[%s17] sm:$0x1] %vm16, %v12
    %s19 = scalar_lea.vmem %s0, 2
    %v20 = vld [vmem:[%s19] sm:$0x1]
    %s21 = scalar_lea.vmem %s0, 2
    %v22 = vld [vmem:[%s21] sm:$0x1]
    %vm23 = vcmask 261120
    %v24 = vsel %vm23, %v22, %v20
    %25 = vrot.lane.b32.xlu0 %v24, 96
    %v26 = vpop.permute.xlu0 %25
    %vm27 = vcmask 130048
    %s28 = scalar_lea.vmem [#allocation0], 1
    %29 = vst.msk [vmem:[%s28] sm:$0x1] %vm27, %v26
    %vm30 = vcmask 1048320
    %31 = vst.msk [vmem:[#allocation0] sm:$0x1] %vm30, %v26
    %s32 = scalar_lea.vmem %s0, 7
    %v33 = vld [vmem:[%s32] sm:$0x1]
    %34 = vrot.lane.b32.xlu0 %v33, 80
    %v35 = vpop.permute.xlu0 %34
    %vm36 = vcmask 1048192
    %s37 = scalar_lea.vmem [#allocation0], 2
    %38 = vst.msk [vmem:[%s37] sm:$0x1] %vm36, %v35
    %s39 = scalar_lea.vmem %s0, 4
    %v40 = vld [vmem:[%s39] sm:$0x1]
    %41 = vrot.lane.b32.xlu0 %v40, 64
    %v42 = vpop.permute.xlu0 %41
    %vm43 = vcmask 916992
    %s44 = scalar_lea.vmem [#allocation0], 1
    %45 = vst.msk [vmem:[%s44] sm:$0x1] %vm43, %v42
    %s46 = scalar_lea.vmem %s0, 1
    %v47 = vld [vmem:[%s46] sm:$0x1]
    %48 = vrot.lane.b32.xlu0 %v47, 48
    %v49 = vpop.permute.xlu0 %48
    %vm50 = vcmask 785792
    %51 = vst.msk [vmem:[#allocation0] sm:$0x1] %vm50, %v49
    %s52 = scalar_lea.vmem %s0, 6
    %v53 = vld [vmem:[%s52] sm:$0x1]
    %54 = vrot.lane.b32.xlu0 %v53, 32
    %v55 = vpop.permute.xlu0 %54
    %vm56 = vcmask 654592
    %s57 = scalar_lea.vmem [#allocation0], 2
    %58 = vst.msk [vmem:[%s57] sm:$0x1] %vm56, %v55
    %s59 = scalar_lea.vmem %s0, 3
    %v60 = vld [vmem:[%s59] sm:$0x1]
    %61 = vrot.lane.b32.xlu0 %v60, 16
    %v62 = vpop.permute.xlu0 %61
    %vm63 = vcmask 523392
    %s64 = scalar_lea.vmem [#allocation0], 1
    %65 = vst.msk [vmem:[%s64] sm:$0x1] %vm63, %v62
    %s67 = sshll.u32 1, 4
    %s68 = ssub.s32 %s67, 1
    %v70 = vld [vmem:[#allocation0] sm:%s68]
    %s71 = sshll.u32 1, 4
    %s72 = ssub.s32 %s71, 1
    %73 = vst [vmem:[%s1] sm:%s72] %v70

// kernel: tile.21
$region0: #{tile.21}
  #allocation0 [shape = 's32[1]{0}', space=sflag, size = 0x4, scoped, tag = 'scoped memory for tile.21']
  %s0 = inlined_call_operand.vmem [shape: f32[48], index: 0, kind: input, shape index: {}]
  %s1 = inlined_call_operand.vmem [shape: f32[8,48], index: 1, kind: output, shape index: {}]
  // Predicated region
  $region2: #{tile.21} parent=0 // pred_check
    _
  $region3: #{tile.21} parent=0 // pred_check_branch
    %3 = sbr.rel (0) target = $region5
  $region4: #{tile.21} parent=0 // pred_region
    _
  $region5: #{tile.21} parent=0 // pred_fallthru
    _
  %v4 = vld [vmem:[%s0] ss:$0 sm:$0xff]
  %5 = vst [vmem:[%s1] sm:$0xff] %v4

// kernel: tile.30
$region0: #{tile.30}
  #allocation0 [shape = 's32[1]{0}', space=sflag, size = 0x4, scoped, tag = 'scoped memory for tile.30']
  %s0 = inlined_call_operand.vmem [shape: f32[4], index: 0, kind: input, shape index: {}]
  %s1 = inlined_call_operand.vmem [shape: f32[8,4], index: 1, kind: output, shape index: {}]
  // Predicated region
  $region2: #{tile.30} parent=0 // pred_check
    _
  $region3: #{tile.30} parent=0 // pred_check_branch
    %3 = sbr.rel (0) target = $region5
  $region4: #{tile.30} parent=0 // pred_region
    _
  $region5: #{tile.30} parent=0 // pred_fallthru
    _
  %v4 = vld [vmem:[%s0] ss:$0 sm:$0xff]
  %5 = vst [vmem:[%s1] sm:$0xff] %v4

// kernel: tile.34
$region0: #{tile.34}
  #allocation0 [shape = 's32[1]{0}', space=sflag, size = 0x4, scoped, tag = 'scoped memory for tile.34']
  %s0 = inlined_call_operand.vmem [shape: f32[32], index: 0, kind: input, shape index: {}]
  %s1 = inlined_call_operand.vmem [shape: f32[4,32], index: 1, kind: output, shape index: {}]
  // Predicated region
  $region2: #{tile.34} parent=0 // pred_check
    _
  $region3: #{tile.34} parent=0 // pred_check_branch
    %3 = sbr.rel (0) target = $region5
  $region4: #{tile.34} parent=0 // pred_region
    _
  $region5: #{tile.34} parent=0 // pred_fallthru
    _
  %v4 = vld [vmem:[%s0] ss:$0 sm:$0xff]
  %5 = vst [vmem:[%s1] sm:$0xf] %v4

// kernel: tile.33
$region0: #{tile.33}
  %s0 = inlined_call_operand.vmem [shape: f32[8,4], index: 0, kind: input, shape index: {}]
  %s1 = inlined_call_operand.vmem [shape: f32[32], index: 1, kind: output, shape index: {}]
  $region1: #{tile.33} parent=0
    #allocation0 [shape = 'u8[4096]{0}', space=vmem, size = 0x1000, scoped, tag = 'scoped mem for output reshape']
    %v2 = vld [vmem:[%s0] sm:$0x1]
    %vm3 = vcmask 31744
    %4 = vst.msk [vmem:[#allocation0] sm:$0x1] %vm3, %v2
    %s5 = scalar_lea.vmem %s0, 7
    %v6 = vld [vmem:[%s5] sm:$0x1]
    %7 = vrot.lane.b32.xlu0 %v6, 28
    %v8 = vpop.permute.xlu0 %7
    %vm9 = vcmask 261344
    %10 = vst.msk [vmem:[#allocation0] sm:$0x1] %vm9, %v8
    %s11 = scalar_lea.vmem %s0, 6
    %v12 = vld [vmem:[%s11] sm:$0x1]
    %13 = vrot.lane.b32.xlu0 %v12, 24
    %v14 = vpop.permute.xlu0 %13
    %vm15 = vcmask 228544
    %16 = vst.msk [vmem:[#allocation0] sm:$0x1] %vm15, %v14
    %s17 = scalar_lea.vmem %s0, 5
    %v18 = vld [vmem:[%s17] sm:$0x1]
    %19 = vrot.lane.b32.xlu0 %v18, 20
    %v20 = vpop.permute.xlu0 %19
    %vm21 = vcmask 195744
    %22 = vst.msk [vmem:[#allocation0] sm:$0x1] %vm21, %v20
    %s23 = scalar_lea.vmem %s0, 4
    %v24 = vld [vmem:[%s23] sm:$0x1]
    %25 = vrot.lane.b32.xlu0 %v24, 16
    %v26 = vpop.permute.xlu0 %25
    %vm27 = vcmask 162944
    %28 = vst.msk [vmem:[#allocation0] sm:$0x1] %vm27, %v26
    %s29 = scalar_lea.vmem %s0, 3
    %v30 = vld [vmem:[%s29] sm:$0x1]
    %31 = vrot.lane.b32.xlu0 %v30, 12
    %v32 = vpop.permute.xlu0 %31
    %vm33 = vcmask 130144
    %34 = vst.msk [vmem:[#allocation0] sm:$0x1] %vm33, %v32
    %s35 = scalar_lea.vmem %s0, 2
    %v36 = vld [vmem:[%s35] sm:$0x1]
    %37 = vrot.lane.b32.xlu0 %v36, 8
    %v38 = vpop.permute.xlu0 %37
    %vm39 = vcmask 97344
    %40 = vst.msk [vmem:[#allocation0] sm:$0x1] %vm39, %v38
    %s41 = scalar_lea.vmem %s0, 1
    %v42 = vld [vmem:[%s41] sm:$0x1]
    %43 = vrot.lane.b32.xlu0 %v42, 4
    %v44 = vpop.permute.xlu0 %43
    %vm45 = vcmask 64544
    %46 = vst.msk [vmem:[#allocation0] sm:$0x1] %vm45, %v44
    %s48 = sshll.u32 1, 1
    %s49 = ssub.s32 %s48, 1
    %v51 = vld [vmem:[#allocation0] sm:%s49]
    %s52 = sshll.u32 1, 1
    %s53 = ssub.s32 %s52, 1
    %54 = vst [vmem:[%s1] sm:%s53] %v51

// kernel: tile.35
$region0: #{tile.35}
  %s0 = inlined_call_operand.vmem [shape: f32[4,32], index: 0, kind: input, shape index: {}]
  %s1 = inlined_call_operand.vmem [shape: f32[1,128], index: 1, kind: output, shape index: {}]
  $region1: #{tile.35} parent=0
    #allocation0 [shape = 'u8[4096]{0}', space=vmem, size = 0x1000, scoped, tag = 'scoped mem for output reshape']
    #allocation1 [shape = 'u8[4096]{0}', space=vmem, size = 0x1000, scoped, tag = 'scoped mem for input reshape']
    %s3 = sshll.u32 1, 4
    %s4 = ssub.s32 %s3, 1
    %v5 = vld [vmem:[%s0] sm:%s4]
    %6 = vst [vmem:[#allocation1] sm:%s4] %v5
    %v7 = vld [vmem:[#allocation1] sm:$0x1]
    %vm8 = vcmask 261120
    %9 = vst.msk [vmem:[#allocation0] sm:$0x1] %vm8, %v7
    %s10 = scalar_lea.vmem [#allocation1], 3
    %v11 = vld [vmem:[%s10] sm:$0x1]
    %12 = vrot.lane.b32.xlu0 %v11, 96
    %v13 = vpop.permute.xlu0 %12
    %vm14 = vcmask 1048320
    %15 = vst.msk [vmem:[#allocation0] sm:$0x1] %vm14, %v13
    %s16 = scalar_lea.vmem [#allocation1], 2
    %v17 = vld [vmem:[%s16] sm:$0x1]
    %18 = vrot.lane.b32.xlu0 %v17, 64
    %v19 = vpop.permute.xlu0 %18
    %vm20 = vcmask 785920
    %21 = vst.msk [vmem:[#allocation0] sm:$0x1] %vm20, %v19
    %s22 = scalar_lea.vmem [#allocation1], 1
    %v23 = vld [vmem:[%s22] sm:$0x1]
    %24 = vrot.lane.b32.xlu0 %v23, 32
    %v25 = vpop.permute.xlu0 %24
    %vm26 = vcmask 523520
    %27 = vst.msk [vmem:[#allocation0] sm:$0x1] %vm26, %v25
    %s29 = sshll.u32 1, 1
    %s30 = ssub.s32 %s29, 1
    %v32 = vld [vmem:[#allocation0] sm:%s30]
    %s33 = sshll.u32 1, 1
    %s34 = ssub.s32 %s33, 1
    %35 = vst [vmem:[%s1] sm:%s34] %v32

// kernel: conv_decoder_forward.3
$region0: #{conv_decoder_forward.3}
  #allocation0 [shape = 'u32[]', space=smem, size = 0x4, offset = 0x4, fixed_abs, tag = 'smem constant byte address 0x4 - core index']
  #allocation1 [shape = 'u32[144,128]{1,0:T(1,128)}', space=vmem, size = 0x12000, scoped, tag = 'internal scratch']
  %s0 = inlined_call_operand.vmem [shape: bf16[32,192], index: 0, kind: input, shape index: {}]
  %s1 = inlined_call_operand.vmem [shape: bf16[192,128], index: 1, kind: input, shape index: {}]
  %s2 = inlined_call_operand.vmem [shape: f32[1,128], index: 2, kind: input, shape index: {}]
  %s3 = inlined_call_operand.vmem [shape: f32[32,128], index: 3, kind: output, shape index: {}]
  %s4 = sld [smem:[#allocation0]]
  $region22: #{conv_decoder_forward.3} parent=0
    _
  %s6 = ssub.s32 1, %s4
  %s7 = scalar_select 0, %s6, %s4
  // Predicated region
  $region2: #{conv_decoder_forward.3} parent=0 // pred_check
    _
  $region3: #{conv_decoder_forward.3} parent=0 // pred_check_branch
    %9 = sbr.rel (0) target = $region5
  $region4: #{conv_decoder_forward.3} parent=0 // pred_region
    _
  $region5: #{conv_decoder_forward.3} parent=0 // pred_fallthru
    _
  // Predicated region
  $region6: #{conv_decoder_forward.3} parent=0 // pred_check
    _
  $region7: #{conv_decoder_forward.3} parent=0 // pred_check_branch
    %11 = sbr.rel (0) target = $region9
  $region8: #{conv_decoder_forward.3} parent=0 // pred_region
    _
  $region9: #{conv_decoder_forward.3} parent=0 // pred_fallthru
    _
  // Predicated region
  $region10: #{conv_decoder_forward.3} parent=0 // pred_check
    _
  $region11: #{conv_decoder_forward.3} parent=0 // pred_check_branch
    %13 = sbr.rel (0) target = $region13
  $region12: #{conv_decoder_forward.3} parent=0 // pred_region
    _
  $region13: #{conv_decoder_forward.3} parent=0 // pred_fallthru
    _
  %v15 = vld [vmem:[%s0] sm:$0xff]
  %v16 = vld [vmem:[%s0 + $0x8] sm:$0xff]
  %v17 = vld [vmem:[%s0 + $0x10] sm:$0xff]
  %v18 = vld [vmem:[%s0 + $0x18] sm:$0xff]
  %v19 = vld [vmem:[%s1] sm:$0xf]
  %v20 = vld [vmem:[%s1 + $0x4] sm:$0xf]
  %v21 = vld [vmem:[%s1 + $0x8] sm:$0xf]
  %v22 = vld [vmem:[%s1 + $0xc] sm:$0xf]
  %v23 = vld [vmem:[%s1 + $0x10] sm:$0xf]
  %v24 = vld [vmem:[%s1 + $0x14] sm:$0xf]
  %v25 = vld [vmem:[%s1 + $0x18] sm:$0xf]
  %v26 = vld [vmem:[%s1 + $0x1c] sm:$0xf]
  %v27 = vld [vmem:[%s1 + $0x20] sm:$0xf]
  %v28 = vld [vmem:[%s1 + $0x24] sm:$0xf]
  %v29 = vld [vmem:[%s1 + $0x28] sm:$0xf]
  %v30 = vld [vmem:[%s1 + $0x2c] sm:$0xf]
  %v31 = vld [vmem:[%s1 + $0x30] sm:$0xf]
  %v32 = vld [vmem:[%s1 + $0x34] sm:$0xf]
  %v33 = vld [vmem:[%s1 + $0x38] sm:$0xf]
  %v34 = vld [vmem:[%s1 + $0x3c] sm:$0xf]
  %v35 = vld [vmem:[%s1 + $0x40] sm:$0xf]
  %v36 = vld [vmem:[%s1 + $0x44] sm:$0xf]
  %v37 = vld [vmem:[%s1 + $0x48] sm:$0xf]
  %v38 = vld [vmem:[%s1 + $0x4c] sm:$0xf]
  %v39 = vld [vmem:[%s1 + $0x50] sm:$0xf]
  %v40 = vld [vmem:[%s1 + $0x54] sm:$0xf]
  %v41 = vld [vmem:[%s1 + $0x58] sm:$0xf]
  %v42 = vld [vmem:[%s1 + $0x5c] sm:$0xf]
  %v43 = vld [vmem:[%s2] sm:$0x1]
  %v45 = vlaneseq
  %v46 = vshrl.u32 %v45, 7
  %v47 = vsub.s32 0, %v46
  %v48 = vrot.slane %v43, %v47
  %v54 = vunpack.c.l.b16 %v15
  %v55 = vunpack.c.h.b16 %v15
  %v56 = vunpack.c.l.b16 %v16
  %v57 = vunpack.c.h.b16 %v16
  %v58 = vunpack.c.l.b16 %v17
  %v59 = vunpack.c.h.b16 %v17
  %v60 = vunpack.c.l.b16 %v18
  %v61 = vunpack.c.h.b16 %v18
  %v62 = vpack.c.b16 %v56, %v54
  %v63 = vpack.c.b16 %v57, %v55
  %v64 = vpack.c.b16 %v60, %v58
  %v65 = vpack.c.b16 %v61, %v59
  %v92 = vunpack.c.l.b16 %v19
  %v93 = vunpack.c.l.b16 %v20
  %v94 = vunpack.c.l.b16 %v21
  %v95 = vunpack.c.l.b16 %v22
  %v96 = vunpack.c.l.b16 %v23
  %v97 = vunpack.c.l.b16 %v24
  %v98 = vunpack.c.l.b16 %v25
  %v99 = vunpack.c.l.b16 %v26
  %v100 = vunpack.c.l.b16 %v27
  %v101 = vunpack.c.l.b16 %v28
  %v102 = vunpack.c.l.b16 %v29
  %v103 = vunpack.c.l.b16 %v30
  %v104 = vunpack.c.l.b16 %v31
  %v105 = vunpack.c.l.b16 %v32
  %v106 = vunpack.c.l.b16 %v33
  %v107 = vunpack.c.l.b16 %v34
  %v108 = vunpack.c.l.b16 %v35
  %v109 = vunpack.c.l.b16 %v36
  %v110 = vunpack.c.l.b16 %v37
  %v111 = vunpack.c.l.b16 %v38
  %v112 = vunpack.c.l.b16 %v39
  %v113 = vunpack.c.l.b16 %v40
  %v114 = vunpack.c.l.b16 %v41
  %v115 = vunpack.c.l.b16 %v42
  %v116 = vpack.c.b16 %v93, %v92
  %v117 = vpack.c.b16 %v95, %v94
  %v118 = vpack.c.b16 %v97, %v96
  %v119 = vpack.c.b16 %v99, %v98
  %v120 = vpack.c.b16 %v101, %v100
  %v121 = vpack.c.b16 %v103, %v102
  %v122 = vpack.c.b16 %v105, %v104
  %v123 = vpack.c.b16 %v107, %v106
  %v124 = vpack.c.b16 %v109, %v108
  %v125 = vpack.c.b16 %v111, %v110
  %v126 = vpack.c.b16 %v113, %v112
  %v127 = vpack.c.b16 %v115, %v114
  %vm140 = vcmask 523264
  %v142 = vsel %vm140, %v63, 0
  %v145 = vsel %vm140, %v65, 0
  %147 = vmatprep.subr.bf16.mxu0 0
  %148 = vmatpush1.bf16.msra.mxu0 %v123
  %149 = vmatprep.subr.bf16.mxu0 0
  %150 = vmatpush1.bf16.msra.mxu0 %v122
  %151 = vmatprep.subr.bf16.mxu0 0
  %152 = vmatpush1.bf16.msra.mxu0 %v121
  %153 = vmatprep.subr.bf16.mxu0 0
  %154 = vmatpush1.bf16.msra.mxu0 %v120
  %155 = vmatprep.subr.bf16.mxu0 0
  %156 = vmatpush1.bf16.msra.mxu0 %v119
  %157 = vmatprep.subr.bf16.mxu0 0
  %158 = vmatpush1.bf16.msra.mxu0 %v118
  %159 = vmatprep.subr.bf16.mxu0 0
  %160 = vmatpush1.bf16.msra.mxu0 %v117
  %161 = vmatprep.subr.bf16.mxu0 0
  %162 = vmatpush1.bf16.msra.mxu0 %v116
  %163 = vmatprep.subr.bf16.mxu0 0
  %164 = vmatpush2.bf16.msra.mxu0 0
  %165 = vmatprep.subr.bf16.mxu0 0
  %166 = vmatpush2.bf16.msra.mxu0 0
  %167 = vmatprep.subr.bf16.mxu0 0
  %168 = vmatpush2.bf16.msra.mxu0 0
  %169 = vmatprep.subr.bf16.mxu0 0
  %170 = vmatpush2.bf16.msra.mxu0 0
  %171 = vmatprep.subr.bf16.mxu0 0
  %172 = vmatpush2.bf16.msra.mxu0 %v127
  %173 = vmatprep.subr.bf16.mxu0 0
  %174 = vmatpush2.bf16.msra.mxu0 %v126
  %175 = vmatprep.subr.bf16.mxu0 0
  %176 = vmatpush2.bf16.msra.mxu0 %v125
  %177 = vmatprep.subr.bf16.mxu0 0
  %178 = vmatpush2.bf16.msra.mxu0 %v124
  %179 = vmatprep.mubr.bf16.mxu0 %v142
  %180 = vmatmul.mubr.bf16.gmra.mxu0 %v62
  %v181 = vpop.f32.mrf.mxu0
  %v182 = vadd.f32 %v48, %v181
  %v183 = vpop.f32.mrf.mxu0
  %v184 = vpop.f32.mrf.mxu0
  %v185 = vadd.f32 %v48, %v184
  %v186 = vpop.f32.mrf.mxu0
  %187 = vmatprep.mubr.bf16.mxu0 %v145
  %188 = vmatmul.mubr.bf16.gmra.mxu0 %v64
  %v189 = vpop.f32.mrf.mxu0
  %v190 = vadd.f32 %v48, %v189
  %v191 = vpop.f32.mrf.mxu0
  %v192 = vpop.f32.mrf.mxu0
  %v193 = vadd.f32 %v48, %v192
  %v194 = vpop.f32.mrf.mxu0
  %195 = vdwg.mxu0
  %196 = vst [vmem:[%s3] sm:$0xff] %v182
  %197 = vst [vmem:[%s3 + $0x8] sm:$0xff] %v185
  %198 = vst [vmem:[%s3 + $0x10] sm:$0xff] %v190
  %199 = vst [vmem:[%s3 + $0x18] sm:$0xff] %v193
  // Predicated region
  $region14: #{conv_decoder_forward.3} parent=0 // pred_check
    _
  $region15: #{conv_decoder_forward.3} parent=0 // pred_check_branch
    %201 = sbr.rel (0) target = $region17
  $region16: #{conv_decoder_forward.3} parent=0 // pred_region
    _
  $region17: #{conv_decoder_forward.3} parent=0 // pred_fallthru
    _
  // Predicated region
  $region18: #{conv_decoder_forward.3} parent=0 // pred_check
    _
  $region19: #{conv_decoder_forward.3} parent=0 // pred_check_branch
    %203 = sbr.rel (0) target = $region21
  $region20: #{conv_decoder_forward.3} parent=0 // pred_region
    _
  $region21: #{conv_decoder_forward.3} parent=0 // pred_fallthru
    _

// kernel: conv_decoder_forward.2
$region0: #{conv_decoder_forward.2}
  #allocation0 [shape = 'u32[]', space=smem, size = 0x4, offset = 0x4, fixed_abs, tag = 'smem constant byte address 0x4 - core index']
  #allocation1 [shape = 'u32[144,128]{1,0:T(1,128)}', space=vmem, size = 0x12000, scoped, tag = 'internal scratch']
  %s0 = inlined_call_operand.vmem [shape: bf16[8,192], index: 0, kind: input, shape index: {}]
  %s1 = inlined_call_operand.vmem [shape: bf16[192,768], index: 1, kind: input, shape index: {}]
  %s2 = inlined_call_operand.vmem [shape: f32[1,768], index: 2, kind: input, shape index: {}]
  %s3 = inlined_call_operand.vmem [shape: bf16[8,768], index: 3, kind: output, shape index: {}]
  %s4 = sld [smem:[#allocation0]]
  $region22: #{conv_decoder_forward.2} parent=0
    _
  %s6 = ssub.s32 1, %s4
  %s7 = scalar_select 0, %s6, %s4
  // Predicated region
  $region2: #{conv_decoder_forward.2} parent=0 // pred_check
    _
  $region3: #{conv_decoder_forward.2} parent=0 // pred_check_branch
    %9 = sbr.rel (0) target = $region5
  $region4: #{conv_decoder_forward.2} parent=0 // pred_region
    _
  $region5: #{conv_decoder_forward.2} parent=0 // pred_fallthru
    _
  // Predicated region
  $region6: #{conv_decoder_forward.2} parent=0 // pred_check
    _
  $region7: #{conv_decoder_forward.2} parent=0 // pred_check_branch
    %11 = sbr.rel (0) target = $region9
  $region8: #{conv_decoder_forward.2} parent=0 // pred_region
    _
  $region9: #{conv_decoder_forward.2} parent=0 // pred_fallthru
    _
  // Predicated region
  $region10: #{conv_decoder_forward.2} parent=0 // pred_check
    _
  $region11: #{conv_decoder_forward.2} parent=0 // pred_check_branch
    %13 = sbr.rel (0) target = $region13
  $region12: #{conv_decoder_forward.2} parent=0 // pred_region
    _
  $region13: #{conv_decoder_forward.2} parent=0 // pred_fallthru
    _
  %v15 = vld [vmem:[%s0] sm:$0xff]
  %v16 = vld [vmem:[%s1] sm:$0xff]
  %v17 = vld [vmem:[%s1 + $0x8] sm:$0xff]
  %v18 = vld [vmem:[%s1 + $0x10] sm:$0xff]
  %v19 = vld [vmem:[%s1 + $0x18] sm:$0xff]
  %v20 = vld [vmem:[%s1 + $0x20] sm:$0xff]
  %v21 = vld [vmem:[%s1 + $0x28] sm:$0xff]
  %v22 = vld [vmem:[%s1 + $0x30] sm:$0xff]
  %v23 = vld [vmem:[%s1 + $0x38] sm:$0xff]
  %v24 = vld [vmem:[%s1 + $0x40] sm:$0xff]
  %v25 = vld [vmem:[%s1 + $0x48] sm:$0xff]
  %v26 = vld [vmem:[%s1 + $0x50] sm:$0xff]
  %v27 = vld [vmem:[%s1 + $0x58] sm:$0xff]
  %v28 = vld [vmem:[%s1 + $0x60] sm:$0xff]
  %v29 = vld [vmem:[%s1 + $0x68] sm:$0xff]
  %v30 = vld [vmem:[%s1 + $0x70] sm:$0xff]
  %v31 = vld [vmem:[%s1 + $0x78] sm:$0xff]
  %v32 = vld [vmem:[%s1 + $0x80] sm:$0xff]
  %v33 = vld [vmem:[%s1 + $0x88] sm:$0xff]
  %v34 = vld [vmem:[%s1 + $0x90] sm:$0xff]
  %v35 = vld [vmem:[%s1 + $0x98] sm:$0xff]
  %v36 = vld [vmem:[%s1 + $0xa0] sm:$0xff]
  %v37 = vld [vmem:[%s1 + $0xa8] sm:$0xff]
  %v38 = vld [vmem:[%s1 + $0xb0] sm:$0xff]
  %v39 = vld [vmem:[%s1 + $0xb8] sm:$0xff]
  %v40 = vld [vmem:[%s1 + $0xc0] sm:$0xff]
  %v41 = vld [vmem:[%s1 + $0xc8] sm:$0xff]
  %v42 = vld [vmem:[%s1 + $0xd0] sm:$0xff]
  %v43 = vld [vmem:[%s1 + $0xd8] sm:$0xff]
  %v44 = vld [vmem:[%s1 + $0xe0] sm:$0xff]
  %v45 = vld [vmem:[%s1 + $0xe8] sm:$0xff]
  %v46 = vld [vmem:[%s1 + $0xf0] sm:$0xff]
  %v47 = vld [vmem:[%s1 + $0xf8] sm:$0xff]
  %v48 = vld [vmem:[%s1 + $0x100] sm:$0xff]
  %v49 = vld [vmem:[%s1 + $0x108] sm:$0xff]
  %v50 = vld [vmem:[%s1 + $0x110] sm:$0xff]
  %v51 = vld [vmem:[%s1 + $0x118] sm:$0xff]
  %v52 = vld [vmem:[%s1 + $0x120] sm:$0xff]
  %v53 = vld [vmem:[%s1 + $0x128] sm:$0xff]
  %v54 = vld [vmem:[%s1 + $0x130] sm:$0xff]
  %v55 = vld [vmem:[%s1 + $0x138] sm:$0xff]
  %v56 = vld [vmem:[%s1 + $0x140] sm:$0xff]
  %v57 = vld [vmem:[%s1 + $0x148] sm:$0xff]
  %v58 = vld [vmem:[%s1 + $0x150] sm:$0xff]
  %v59 = vld [vmem:[%s1 + $0x158] sm:$0xff]
  %v60 = vld [vmem:[%s1 + $0x160] sm:$0xff]
  %v61 = vld [vmem:[%s1 + $0x168] sm:$0xff]
  %v62 = vld [vmem:[%s1 + $0x170] sm:$0xff]
  %v63 = vld [vmem:[%s1 + $0x178] sm:$0xff]
  %v64 = vld [vmem:[%s1 + $0x180] sm:$0xff]
  %v65 = vld [vmem:[%s1 + $0x188] sm:$0xff]
  %v66 = vld [vmem:[%s1 + $0x190] sm:$0xff]
  %v67 = vld [vmem:[%s1 + $0x198] sm:$0xff]
  %v68 = vld [vmem:[%s1 + $0x1a0] sm:$0xff]
  %v69 = vld [vmem:[%s1 + $0x1a8] sm:$0xff]
  %v70 = vld [vmem:[%s1 + $0x1b0] sm:$0xff]
  %v71 = vld [vmem:[%s1 + $0x1b8] sm:$0xff]
  %v72 = vld [vmem:[%s1 + $0x1c0] sm:$0xff]
  %v73 = vld [vmem:[%s1 + $0x1c8] sm:$0xff]
  %v74 = vld [vmem:[%s1 + $0x1d0] sm:$0xff]
  %v75 = vld [vmem:[%s1 + $0x1d8] sm:$0xff]
  %v76 = vld [vmem:[%s1 + $0x1e0] sm:$0xff]
  %v77 = vld [vmem:[%s1 + $0x1e8] sm:$0xff]
  %v78 = vld [vmem:[%s1 + $0x1f0] sm:$0xff]
  %v79 = vld [vmem:[%s1 + $0x1f8] sm:$0xff]
  %v80 = vld [vmem:[%s1 + $0x200] sm:$0xff]
  %v81 = vld [vmem:[%s1 + $0x208] sm:$0xff]
  %v82 = vld [vmem:[%s1 + $0x210] sm:$0xff]
  %v83 = vld [vmem:[%s1 + $0x218] sm:$0xff]
  %v84 = vld [vmem:[%s1 + $0x220] sm:$0xff]
  %v85 = vld [vmem:[%s1 + $0x228] sm:$0xff]
  %v86 = vld [vmem:[%s1 + $0x230] sm:$0xff]
  %v87 = vld [vmem:[%s1 + $0x238] sm:$0xff]
  %v88 = vld [vmem:[%s2] sm:$0x3f]
  %v90 = vlaneseq
  %v91 = vshrl.u32 %v90, 7
  %v92 = vsub.s32 0, %v91
  %v93 = vrot.slane %v88, %v92
  %v94 = vlaneseq
  %v95 = vshrl.u32 %v94, 7
  %v96 = vsub.s32 1, %v95
  %v97 = vrot.slane %v88, %v96
  %v98 = vlaneseq
  %v99 = vshrl.u32 %v98, 7
  %v100 = vsub.s32 2, %v99
  %v101 = vrot.slane %v88, %v100
  %v102 = vlaneseq
  %v103 = vshrl.u32 %v102, 7
  %v104 = vsub.s32 3, %v103
  %v105 = vrot.slane %v88, %v104
  %v106 = vlaneseq
  %v107 = vshrl.u32 %v106, 7
  %v108 = vsub.s32 4, %v107
  %v109 = vrot.slane %v88, %v108
  %v110 = vlaneseq
  %v111 = vshrl.u32 %v110, 7
  %v112 = vsub.s32 5, %v111
  %v113 = vrot.slane %v88, %v112
  %v121 = vunpack.c.l.b16 %v15
  %v122 = vunpack.c.h.b16 %v15
  %v123 = vpack.c.b16 %v121, %v121
  %v124 = vpack.c.b16 %v122, %v122
  %v198 = vunpack.c.l.b16 %v16
  %v199 = vunpack.c.h.b16 %v16
  %v200 = vunpack.c.l.b16 %v17
  %v201 = vunpack.c.h.b16 %v17
  %v202 = vunpack.c.l.b16 %v18
  %v203 = vunpack.c.h.b16 %v18
  %v204 = vunpack.c.l.b16 %v19
  %v205 = vunpack.c.h.b16 %v19
  %v206 = vunpack.c.l.b16 %v20
  %v207 = vunpack.c.h.b16 %v20
  %v208 = vunpack.c.l.b16 %v21
  %v209 = vunpack.c.h.b16 %v21
  %v210 = vunpack.c.l.b16 %v22
  %v211 = vunpack.c.h.b16 %v22
  %v212 = vunpack.c.l.b16 %v23
  %v213 = vunpack.c.h.b16 %v23
  %v214 = vunpack.c.l.b16 %v24
  %v215 = vunpack.c.h.b16 %v24
  %v216 = vunpack.c.l.b16 %v25
  %v217 = vunpack.c.h.b16 %v25
  %v218 = vunpack.c.l.b16 %v26
  %v219 = vunpack.c.h.b16 %v26
  %v220 = vunpack.c.l.b16 %v27
  %v221 = vunpack.c.h.b16 %v27
  %v222 = vunpack.c.l.b16 %v28
  %v223 = vunpack.c.h.b16 %v28
  %v224 = vunpack.c.l.b16 %v29
  %v225 = vunpack.c.h.b16 %v29
  %v226 = vunpack.c.l.b16 %v30
  %v227 = vunpack.c.h.b16 %v30
  %v228 = vunpack.c.l.b16 %v31
  %v229 = vunpack.c.h.b16 %v31
  %v230 = vunpack.c.l.b16 %v32
  %v231 = vunpack.c.h.b16 %v32
  %v232 = vunpack.c.l.b16 %v33
  %v233 = vunpack.c.h.b16 %v33
  %v234 = vunpack.c.l.b16 %v34
  %v235 = vunpack.c.h.b16 %v34
  %v236 = vunpack.c.l.b16 %v35
  %v237 = vunpack.c.h.b16 %v35
  %v238 = vunpack.c.l.b16 %v36
  %v239 = vunpack.c.h.b16 %v36
  %v240 = vunpack.c.l.b16 %v37
  %v241 = vunpack.c.h.b16 %v37
  %v242 = vunpack.c.l.b16 %v38
  %v243 = vunpack.c.h.b16 %v38
  %v244 = vunpack.c.l.b16 %v39
  %v245 = vunpack.c.h.b16 %v39
  %v246 = vunpack.c.l.b16 %v40
  %v247 = vunpack.c.h.b16 %v40
  %v248 = vunpack.c.l.b16 %v41
  %v249 = vunpack.c.h.b16 %v41
  %v250 = vunpack.c.l.b16 %v42
  %v251 = vunpack.c.h.b16 %v42
  %v252 = vunpack.c.l.b16 %v43
  %v253 = vunpack.c.h.b16 %v43
  %v254 = vunpack.c.l.b16 %v44
  %v255 = vunpack.c.h.b16 %v44
  %v256 = vunpack.c.l.b16 %v45
  %v257 = vunpack.c.h.b16 %v45
  %v258 = vunpack.c.l.b16 %v46
  %v259 = vunpack.c.h.b16 %v46
  %v260 = vunpack.c.l.b16 %v47
  %v261 = vunpack.c.h.b16 %v47
  %v262 = vunpack.c.l.b16 %v48
  %v263 = vunpack.c.h.b16 %v48
  %v264 = vunpack.c.l.b16 %v49
  %v265 = vunpack.c.h.b16 %v49
  %v266 = vunpack.c.l.b16 %v50
  %v267 = vunpack.c.h.b16 %v50
  %v268 = vunpack.c.l.b16 %v51
  %v269 = vunpack.c.h.b16 %v51
  %v270 = vunpack.c.l.b16 %v52
  %v271 = vunpack.c.h.b16 %v52
  %v272 = vunpack.c.l.b16 %v53
  %v273 = vunpack.c.h.b16 %v53
  %v274 = vunpack.c.l.b16 %v54
  %v275 = vunpack.c.h.b16 %v54
  %v276 = vunpack.c.l.b16 %v55
  %v277 = vunpack.c.h.b16 %v55
  %v278 = vunpack.c.l.b16 %v56
  %v279 = vunpack.c.h.b16 %v56
  %v280 = vunpack.c.l.b16 %v57
  %v281 = vunpack.c.h.b16 %v57
  %v282 = vunpack.c.l.b16 %v58
  %v283 = vunpack.c.h.b16 %v58
  %v284 = vunpack.c.l.b16 %v59
  %v285 = vunpack.c.h.b16 %v59
  %v286 = vunpack.c.l.b16 %v60
  %v287 = vunpack.c.h.b16 %v60
  %v288 = vunpack.c.l.b16 %v61
  %v289 = vunpack.c.h.b16 %v61
  %v290 = vunpack.c.l.b16 %v62
  %v291 = vunpack.c.h.b16 %v62
  %v292 = vunpack.c.l.b16 %v63
  %v293 = vunpack.c.h.b16 %v63
  %v294 = vunpack.c.l.b16 %v64
  %v295 = vunpack.c.h.b16 %v64
  %v296 = vunpack.c.l.b16 %v65
  %v297 = vunpack.c.h.b16 %v65
  %v298 = vunpack.c.l.b16 %v66
  %v299 = vunpack.c.h.b16 %v66
  %v300 = vunpack.c.l.b16 %v67
  %v301 = vunpack.c.h.b16 %v67
  %v302 = vunpack.c.l.b16 %v68
  %v303 = vunpack.c.h.b16 %v68
  %v304 = vunpack.c.l.b16 %v69
  %v305 = vunpack.c.h.b16 %v69
  %v306 = vunpack.c.l.b16 %v70
  %v307 = vunpack.c.h.b16 %v70
  %v308 = vunpack.c.l.b16 %v71
  %v309 = vunpack.c.h.b16 %v71
  %v310 = vunpack.c.l.b16 %v72
  %v311 = vunpack.c.h.b16 %v72
  %v312 = vunpack.c.l.b16 %v73
  %v313 = vunpack.c.h.b16 %v73
  %v314 = vunpack.c.l.b16 %v74
  %v315 = vunpack.c.h.b16 %v74
  %v316 = vunpack.c.l.b16 %v75
  %v317 = vunpack.c.h.b16 %v75
  %v318 = vunpack.c.l.b16 %v76
  %v319 = vunpack.c.h.b16 %v76
  %v320 = vunpack.c.l.b16 %v77
  %v321 = vunpack.c.h.b16 %v77
  %v322 = vunpack.c.l.b16 %v78
  %v323 = vunpack.c.h.b16 %v78
  %v324 = vunpack.c.l.b16 %v79
  %v325 = vunpack.c.h.b16 %v79
  %v326 = vunpack.c.l.b16 %v80
  %v327 = vunpack.c.h.b16 %v80
  %v328 = vunpack.c.l.b16 %v81
  %v329 = vunpack.c.h.b16 %v81
  %v330 = vunpack.c.l.b16 %v82
  %v331 = vunpack.c.h.b16 %v82
  %v332 = vunpack.c.l.b16 %v83
  %v333 = vunpack.c.h.b16 %v83
  %v334 = vunpack.c.l.b16 %v84
  %v335 = vunpack.c.h.b16 %v84
  %v336 = vunpack.c.l.b16 %v85
  %v337 = vunpack.c.h.b16 %v85
  %v338 = vunpack.c.l.b16 %v86
  %v339 = vunpack.c.h.b16 %v86
  %v340 = vunpack.c.l.b16 %v87
  %v341 = vunpack.c.h.b16 %v87
  %v342 = vpack.c.b16 %v204, %v198
  %v343 = vpack.c.b16 %v205, %v199
  %v344 = vpack.c.b16 %v206, %v200
  %v345 = vpack.c.b16 %v207, %v201
  %v346 = vpack.c.b16 %v208, %v202
  %v347 = vpack.c.b16 %v209, %v203
  %v348 = vpack.c.b16 %v216, %v210
  %v349 = vpack.c.b16 %v217, %v211
  %v350 = vpack.c.b16 %v218, %v212
  %v351 = vpack.c.b16 %v219, %v213
  %v352 = vpack.c.b16 %v220, %v214
  %v353 = vpack.c.b16 %v221, %v215
  %v354 = vpack.c.b16 %v228, %v222
  %v355 = vpack.c.b16 %v229, %v223
  %v356 = vpack.c.b16 %v230, %v224
  %v357 = vpack.c.b16 %v231, %v225
  %v358 = vpack.c.b16 %v232, %v226
  %v359 = vpack.c.b16 %v233, %v227
  %v360 = vpack.c.b16 %v240, %v234
  %v361 = vpack.c.b16 %v241, %v235
  %v362 = vpack.c.b16 %v242, %v236
  %v363 = vpack.c.b16 %v243, %v237
  %v364 = vpack.c.b16 %v244, %v238
  %v365 = vpack.c.b16 %v245, %v239
  %v366 = vpack.c.b16 %v252, %v246
  %v367 = vpack.c.b16 %v253, %v247
  %v368 = vpack.c.b16 %v254, %v248
  %v369 = vpack.c.b16 %v255, %v249
  %v370 = vpack.c.b16 %v256, %v250
  %v371 = vpack.c.b16 %v257, %v251
  %v372 = vpack.c.b16 %v264, %v258
  %v373 = vpack.c.b16 %v265, %v259
  %v374 = vpack.c.b16 %v266, %v260
  %v375 = vpack.c.b16 %v267, %v261
  %v376 = vpack.c.b16 %v268, %v262
  %v377 = vpack.c.b16 %v269, %v263
  %v378 = vpack.c.b16 %v276, %v270
  %v379 = vpack.c.b16 %v277, %v271
  %v380 = vpack.c.b16 %v278, %v272
  %v381 = vpack.c.b16 %v279, %v273
  %v382 = vpack.c.b16 %v280, %v274
  %v383 = vpack.c.b16 %v281, %v275
  %v384 = vpack.c.b16 %v288, %v282
  %v385 = vpack.c.b16 %v289, %v283
  %v386 = vpack.c.b16 %v290, %v284
  %v387 = vpack.c.b16 %v291, %v285
  %v388 = vpack.c.b16 %v292, %v286
  %v389 = vpack.c.b16 %v293, %v287
  %v390 = vpack.c.b16 %v300, %v294
  %v391 = vpack.c.b16 %v301, %v295
  %v392 = vpack.c.b16 %v302, %v296
  %v393 = vpack.c.b16 %v303, %v297
  %v394 = vpack.c.b16 %v304, %v298
  %v395 = vpack.c.b16 %v305, %v299
  %v396 = vpack.c.b16 %v312, %v306
  %v397 = vpack.c.b16 %v313, %v307
  %v398 = vpack.c.b16 %v314, %v308
  %v399 = vpack.c.b16 %v315, %v309
  %v400 = vpack.c.b16 %v316, %v310
  %v401 = vpack.c.b16 %v317, %v311
  %v402 = vpack.c.b16 %v324, %v318
  %v403 = vpack.c.b16 %v325, %v319
  %v404 = vpack.c.b16 %v326, %v320
  %v405 = vpack.c.b16 %v327, %v321
  %v406 = vpack.c.b16 %v328, %v322
  %v407 = vpack.c.b16 %v329, %v323
  %v408 = vpack.c.b16 %v336, %v330
  %v409 = vpack.c.b16 %v337, %v331
  %v410 = vpack.c.b16 %v338, %v332
  %v411 = vpack.c.b16 %v339, %v333
  %v412 = vpack.c.b16 %v340, %v334
  %v413 = vpack.c.b16 %v341, %v335
  %vm486 = vcmask 523264
  %v488 = vsel %vm486, %v124, 0
  %490 = vmatprep.subr.bf16.mxu0 %v385
  %491 = vmatpush1.bf16.msra.mxu0 %v384
  %492 = vmatprep.subr.bf16.mxu0 %v379
  %493 = vmatpush1.bf16.msra.mxu0 %v378
  %494 = vmatprep.subr.bf16.mxu0 %v373
  %495 = vmatpush1.bf16.msra.mxu0 %v372
  %496 = vmatprep.subr.bf16.mxu0 %v367
  %497 = vmatpush1.bf16.msra.mxu0 %v366
  %498 = vmatprep.subr.bf16.mxu0 %v361
  %499 = vmatpush1.bf16.msra.mxu0 %v360
  %500 = vmatprep.subr.bf16.mxu0 %v355
  %501 = vmatpush1.bf16.msra.mxu0 %v354
  %502 = vmatprep.subr.bf16.mxu0 %v349
  %503 = vmatpush1.bf16.msra.mxu0 %v348
  %504 = vmatprep.subr.bf16.mxu0 %v343
  %505 = vmatpush1.bf16.msra.mxu0 %v342
  %506 = vmatprep.subr.bf16.mxu0 0
  %507 = vmatpush2.bf16.msra.mxu0 0
  %508 = vmatprep.subr.bf16.mxu0 0
  %509 = vmatpush2.bf16.msra.mxu0 0
  %510 = vmatprep.subr.bf16.mxu0 0
  %511 = vmatpush2.bf16.msra.mxu0 0
  %512 = vmatprep.subr.bf16.mxu0 0
  %513 = vmatpush2.bf16.msra.mxu0 0
  %514 = vmatprep.subr.bf16.mxu0 %v409
  %515 = vmatpush2.bf16.msra.mxu0 %v408
  %516 = vmatprep.subr.bf16.mxu0 %v403
  %517 = vmatpush2.bf16.msra.mxu0 %v402
  %518 = vmatprep.subr.bf16.mxu0 %v397
  %519 = vmatpush2.bf16.msra.mxu0 %v396
  %520 = vmatprep.subr.bf16.mxu0 %v391
  %521 = vmatpush2.bf16.msra.mxu0 %v390
  %522 = vmatprep.mubr.bf16.mxu0 %v488
  %523 = vmatmul.mubr.bf16.gmra.mxu0 %v123
  %v524 = vpop.f32.mrf.mxu0
  %v525 = vadd.f32 %v93, %v524
  %v526 = vpop.f32.mrf.mxu0
  %v527 = vadd.f32 %v97, %v526
  %v528 = vpop.f32.mrf.mxu0
  %v529 = vpop.f32.mrf.mxu0
  %530 = vdwg.mxu0
  %531 = vmatprep.subr.bf16.mxu0 %v387
  %532 = vmatpush1.bf16.msra.mxu0 %v386
  %533 = vmatprep.subr.bf16.mxu0 %v381
  %534 = vmatpush1.bf16.msra.mxu0 %v380
  %535 = vmatprep.subr.bf16.mxu0 %v375
  %536 = vmatpush1.bf16.msra.mxu0 %v374
  %537 = vmatprep.subr.bf16.mxu0 %v369
  %538 = vmatpush1.bf16.msra.mxu0 %v368
  %539 = vmatprep.subr.bf16.mxu0 %v363
  %540 = vmatpush1.bf16.msra.mxu0 %v362
  %541 = vmatprep.subr.bf16.mxu0 %v357
  %542 = vmatpush1.bf16.msra.mxu0 %v356
  %543 = vmatprep.subr.bf16.mxu0 %v351
  %544 = vmatpush1.bf16.msra.mxu0 %v350
  %545 = vmatprep.subr.bf16.mxu0 %v345
  %546 = vmatpush1.bf16.msra.mxu0 %v344
  %547 = vmatprep.subr.bf16.mxu0 0
  %548 = vmatpush2.bf16.msra.mxu0 0
  %549 = vmatprep.subr.bf16.mxu0 0
  %550 = vmatpush2.bf16.msra.mxu0 0
  %551 = vmatprep.subr.bf16.mxu0 0
  %552 = vmatpush2.bf16.msra.mxu0 0
  %553 = vmatprep.subr.bf16.mxu0 0
  %554 = vmatpush2.bf16.msra.mxu0 0
  %555 = vmatprep.subr.bf16.mxu0 %v411
  %556 = vmatpush2.bf16.msra.mxu0 %v410
  %557 = vmatprep.subr.bf16.mxu0 %v405
  %558 = vmatpush2.bf16.msra.mxu0 %v404
  %559 = vmatprep.subr.bf16.mxu0 %v399
  %560 = vmatpush2.bf16.msra.mxu0 %v398
  %561 = vmatprep.subr.bf16.mxu0 %v393
  %562 = vmatpush2.bf16.msra.mxu0 %v392
  %563 = vmatprep.mubr.bf16.mxu0 %v488
  %564 = vmatmul.mubr.bf16.gmra.mxu0 %v123
  %v565 = vpop.f32.mrf.mxu0
  %v566 = vadd.f32 %v101, %v565
  %v567 = vpop.f32.mrf.mxu0
  %v568 = vadd.f32 %v105, %v567
  %v569 = vpop.f32.mrf.mxu0
  %v570 = vpop.f32.mrf.mxu0
  %571 = vdwg.mxu0
  %572 = vmatprep.subr.bf16.mxu0 %v389
  %573 = vmatpush1.bf16.msra.mxu0 %v388
  %574 = vmatprep.subr.bf16.mxu0 %v383
  %575 = vmatpush1.bf16.msra.mxu0 %v382
  %576 = vmatprep.subr.bf16.mxu0 %v377
  %577 = vmatpush1.bf16.msra.mxu0 %v376
  %578 = vmatprep.subr.bf16.mxu0 %v371
  %579 = vmatpush1.bf16.msra.mxu0 %v370
  %580 = vmatprep.subr.bf16.mxu0 %v365
  %581 = vmatpush1.bf16.msra.mxu0 %v364
  %582 = vmatprep.subr.bf16.mxu0 %v359
  %583 = vmatpush1.bf16.msra.mxu0 %v358
  %584 = vmatprep.subr.bf16.mxu0 %v353
  %585 = vmatpush1.bf16.msra.mxu0 %v352
  %586 = vmatprep.subr.bf16.mxu0 %v347
  %587 = vmatpush1.bf16.msra.mxu0 %v346
  %588 = vmatprep.subr.bf16.mxu0 0
  %589 = vmatpush2.bf16.msra.mxu0 0
  %590 = vmatprep.subr.bf16.mxu0 0
  %591 = vmatpush2.bf16.msra.mxu0 0
  %592 = vmatprep.subr.bf16.mxu0 0
  %593 = vmatpush2.bf16.msra.mxu0 0
  %594 = vmatprep.subr.bf16.mxu0 0
  %595 = vmatpush2.bf16.msra.mxu0 0
  %596 = vmatprep.subr.bf16.mxu0 %v413
  %597 = vmatpush2.bf16.msra.mxu0 %v412
  %598 = vmatprep.subr.bf16.mxu0 %v407
  %599 = vmatpush2.bf16.msra.mxu0 %v406
  %600 = vmatprep.subr.bf16.mxu0 %v401
  %601 = vmatpush2.bf16.msra.mxu0 %v400
  %602 = vmatprep.subr.bf16.mxu0 %v395
  %603 = vmatpush2.bf16.msra.mxu0 %v394
  %604 = vmatprep.mubr.bf16.mxu0 %v488
  %605 = vmatmul.mubr.bf16.gmra.mxu0 %v123
  %v606 = vpop.f32.mrf.mxu0
  %v607 = vadd.f32 %v109, %v606
  %v608 = vpop.f32.mrf.mxu0
  %v609 = vadd.f32 %v113, %v608
  %v610 = vpop.f32.mrf.mxu0
  %v611 = vpop.f32.mrf.mxu0
  %612 = vdwg.mxu0
  %v613 = vpack.c.bf16 %v525, %v525
  %v614 = vpack.c.bf16 %v527, %v527
  %v615 = vpack.c.bf16 %v566, %v566
  %v616 = vpack.c.bf16 %v568, %v568
  %v617 = vpack.c.bf16 %v607, %v607
  %v618 = vpack.c.bf16 %v609, %v609
  %v625 = vunpack.c.l.b16 %v613
  %v626 = vunpack.c.l.b16 %v614
  %v627 = vunpack.c.l.b16 %v615
  %v628 = vunpack.c.l.b16 %v616
  %v629 = vunpack.c.l.b16 %v617
  %v630 = vunpack.c.l.b16 %v618
  %v631 = vpack.c.b16 %v626, %v625
  %v632 = vpack.c.b16 %v628, %v627
  %v633 = vpack.c.b16 %v630, %v629
  %637 = vst [vmem:[%s3] sm:$0xff] %v631
  %638 = vst [vmem:[%s3 + $0x8] sm:$0xff] %v632
  %639 = vst [vmem:[%s3 + $0x10] sm:$0xff] %v633
  // Predicated region
  $region14: #{conv_decoder_forward.2} parent=0 // pred_check
    _
  $region15: #{conv_decoder_forward.2} parent=0 // pred_check_branch
    %641 = sbr.rel (0) target = $region17
  $region16: #{conv_decoder_forward.2} parent=0 // pred_region
    _
  $region17: #{conv_decoder_forward.2} parent=0 // pred_fallthru
    _
  // Predicated region
  $region18: #{conv_decoder_forward.2} parent=0 // pred_check
    _
  $region19: #{conv_decoder_forward.2} parent=0 // pred_check_branch
    %643 = sbr.rel (0) target = $region21
  $region20: #{conv_decoder_forward.2} parent=0 // pred_region
    _
  $region21: #{conv_decoder_forward.2} parent=0 // pred_fallthru
    _

</llo_original>
